<compile_context>
chip_gen: v7x
topology: tpu7x:2x2x1
jax: 0.10.0
libtpu: 0.0.40
codegen_flags: <defaults>
</compile_context>

<pallas_src>
import jax
import jax.numpy as jnp
from jax.experimental import pallas as pl
from jax.experimental.pallas import tpu as pltpu

IN_F = 1000          # fc1 in_features
HID_F = 110          # fc1 out_features / fc2 in_features
OUT_F = 100          # fc2 out_features
HID_P = 128          # lane-padded hidden dim
OUT_P = 128          # lane-padded output dim
TB_MAX = 512         # batch tile (rows per grid step)


def prepare_params(p1, w1, p2, w2, dtype=jnp.bfloat16):
    """One-time parameter prep (hoisted out of the per-call path).

    Folds the scale vectors into the transposed weights, casts to bf16 and
    zero-pads the hidden/output feature dims to lane multiples of 128.

      w1t_p: (1000, 128)  =  pad( p1[:, None] * w1.T )
      w2t_p: ( 128, 128)  =  pad( p2[:, None] * w2.T )
    """
    w1t = p1[:, None] * w1.T                      # (1000, 110)
    w2t = p2[:, None] * w2.T                      # (110, 100)
    w1t_p = jnp.zeros((IN_F, HID_P), dtype).at[:, :HID_F].set(w1t.astype(dtype))
    w2t_p = jnp.zeros((HID_P, OUT_P), dtype).at[:HID_F, :OUT_F].set(w2t.astype(dtype))
    return w1t_p, w2t_p


def _testnn_kernel(x_ref, w1t_ref, w2t_ref, o_ref):
    # Two back-to-back MXU matmuls; scales already folded into the weights.
    xb = x_ref[...].astype(jnp.bfloat16)                      # (TB, 1000)
    h = jnp.dot(xb, w1t_ref[...],                             # (TB, 128) f32 acc
                preferred_element_type=jnp.float32)
    o_ref[...] = jnp.dot(h.astype(jnp.bfloat16), w2t_ref[...],
                         preferred_element_type=jnp.float32)  # (TB, 128) f32


def testnn_forward(x, w1t_p, w2t_p, *, tb=TB_MAX):
    """x: (B, 1000) f32; w1t_p: (1000, 128) bf16; w2t_p: (128, 128) bf16."""
    B = x.shape[0]
    tb = min(tb, B)                       # full batch if small, else 512-row tiles
    grid = (pl.cdiv(B, tb),)

    out_padded = pl.pallas_call(
        _testnn_kernel,
        out_shape=jax.ShapeDtypeStruct((B, OUT_P), jnp.float32),
        grid=grid,
        in_specs=[
            pl.BlockSpec((tb, IN_F), lambda i: (i, 0)),       # x tile per step
            pl.BlockSpec((IN_F, HID_P), lambda i: (0, 0)),    # full weight, reused
            pl.BlockSpec((HID_P, OUT_P), lambda i: (0, 0)),   # full weight, reused
        ],
        out_specs=pl.BlockSpec((tb, OUT_P), lambda i: (i, 0)),
        compiler_params=pltpu.CompilerParams(
            dimension_semantics=("parallel",)),               # megacore on v7x
    )(x, w1t_p, w2t_p)

    return out_padded[:, :OUT_F]          # drop lane padding (100 real cols)


if __name__ == "__main__":
    key = jax.random.PRNGKey(0)
    k_x, k_p1, k_w1, k_p2, k_w2 = jax.random.split(key, 5)

    B = 8
    x = jax.random.normal(k_x, (B, IN_F), dtype=jnp.float32)

    # Deterministic synthetic parameters (shapes from TestNN.__init__).
    p1 = jax.random.normal(k_p1, (IN_F,), dtype=jnp.float32)
    p2 = jax.random.normal(k_p2, (HID_F,), dtype=jnp.float32)
    # nn.Linear default init: uniform(-1/sqrt(fan_in), 1/sqrt(fan_in)).
    w1 = jax.random.uniform(k_w1, (HID_F, IN_F), dtype=jnp.float32,
                            minval=-1.0 / (IN_F ** 0.5), maxval=1.0 / (IN_F ** 0.5))
    w2 = jax.random.uniform(k_w2, (OUT_F, HID_F), dtype=jnp.float32,
                            minval=-1.0 / (HID_F ** 0.5), maxval=1.0 / (HID_F ** 0.5))

    # One-time prep (transpose + scale fold + bf16 + padding), outside the call path.
    w1t_p, w2t_p = prepare_params(p1, w1, p2, w2)
    w1t_p, w2t_p = jax.block_until_ready((w1t_p, w2t_p))

    fwd = jax.jit(testnn_forward)
    out = fwd(x, w1t_p, w2t_p)
    out = jax.block_until_ready(out)

    # Pure-JAX f32 reference of the PyTorch forward (biases are zero).
    ref = ((x * p1) @ w1.T) * p2 @ w2.T
    assert out.shape == (B, OUT_F)
    # bf16 weights/activations with f32 accumulation -> loosened tolerance.
    assert jnp.allclose(out, ref, atol=2e-2, rtol=2e-2), "mismatch vs reference"

    print("KERNEL_OK")
</pallas_src>

<mosaic_0001>
module attributes {stable_mosaic.version = 11 : i64} {
  func.func @_testnn_kernel(%arg0: i32, %arg1: memref<8x1000xf32, #tpu.memory_space<vmem>>, %arg2: memref<1000x128xbf16, #tpu.memory_space<vmem>>, %arg3: memref<128x128xbf16, #tpu.memory_space<vmem>>, %arg4: memref<8x128xf32, #tpu.memory_space<vmem>>) attributes {dimension_semantics = [#tpu.dimension_semantics<parallel>], iteration_bounds = array<i64: 1>, scalar_prefetch = 0 : i64, scratch_operands = 0 : i64, tpu.core_type = #tpu.core_type<tc>, window_params = [{transform_indices = @transform_0, window_bounds = array<i64: 8, 1000>}, {pipeline_mode = #tpu.pipeline_mode<synchronous>, transform_indices = @transform_1, window_bounds = array<i64: 1000, 128>}, {pipeline_mode = #tpu.pipeline_mode<synchronous>, transform_indices = @transform_2, window_bounds = array<i64: 128, 128>}, {transform_indices = @transform_3, window_bounds = array<i64: 8, 128>}]} {
    %c0 = arith.constant 0 : index
    %c0_0 = arith.constant 0 : index
    %0 = vector.load %arg1[%c0, %c0_0] : memref<8x1000xf32, #tpu.memory_space<vmem>>, vector<8x1000xf32>
    %1 = arith.truncf %0 : vector<8x1000xf32> to vector<8x1000xbf16>
    %c0_1 = arith.constant 0 : index
    %c0_2 = arith.constant 0 : index
    %2 = vector.load %arg2[%c0_1, %c0_2] : memref<1000x128xbf16, #tpu.memory_space<vmem>>, vector<1000x128xbf16>
    %cst = arith.constant dense<0.000000e+00> : vector<8x128xf32>
    %3 = tpu.matmul %1, %2, %cst {dimension_numbers = #tpu.dot_dimension_numbers<[1], [0], [0], [1], [0, 0, 1, 1], [], []>} : vector<8x1000xbf16>, vector<1000x128xbf16>, vector<8x128xf32> -> vector<8x128xf32>
    %4 = arith.truncf %3 : vector<8x128xf32> to vector<8x128xbf16>
    %c0_3 = arith.constant 0 : index
    %c0_4 = arith.constant 0 : index
    %5 = vector.load %arg3[%c0_3, %c0_4] : memref<128x128xbf16, #tpu.memory_space<vmem>>, vector<128x128xbf16>
    %cst_5 = arith.constant dense<0.000000e+00> : vector<8x128xf32>
    %6 = tpu.matmul %4, %5, %cst_5 {dimension_numbers = #tpu.dot_dimension_numbers<[1], [0], [0], [1], [0, 0, 1, 1], [], []>} : vector<8x128xbf16>, vector<128x128xbf16>, vector<8x128xf32> -> vector<8x128xf32>
    %c0_6 = arith.constant 0 : index
    %c0_7 = arith.constant 0 : index
    %7 = vector.load %arg4[%c0_6, %c0_7] : memref<8x128xf32, #tpu.memory_space<vmem>>, vector<8x128xf32>
    tpu.vector_store %arg4[%c0_6, %c0_7], %6 {strides = array<i32>} : memref<8x128xf32, #tpu.memory_space<vmem>>, vector<8x128xf32>,
    return
  }
  func.func @transform_0(%arg0: i32) -> (i32, i32) {
    %c0_i32 = arith.constant 0 : i32
    %c0_i32_0 = arith.constant 0 : i32
    return %arg0, %c0_i32 : i32, i32
  }
  func.func @transform_1(%arg0: i32) -> (i32, i32) {
    %c0_i32 = arith.constant 0 : i32
    %c0_i32_0 = arith.constant 0 : i32
    %c0_i32_1 = arith.constant 0 : i32
    return %c0_i32, %c0_i32_0 : i32, i32
  }
  func.func @transform_2(%arg0: i32) -> (i32, i32) {
    %c0_i32 = arith.constant 0 : i32
    %c0_i32_0 = arith.constant 0 : i32
    %c0_i32_1 = arith.constant 0 : i32
    return %c0_i32, %c0_i32_0 : i32, i32
  }
  func.func @transform_3(%arg0: i32) -> (i32, i32) {
    %c0_i32 = arith.constant 0 : i32
    %c0_i32_0 = arith.constant 0 : i32
    return %arg0, %c0_i32 : i32, i32
  }
}

</mosaic_0001>

<llo_original>
// kernel: testnn_forward.1
$region0: #{testnn_forward.1}
  #allocation0 [shape = 'u32[]', space=smem, size = 0x4, offset = 0x4, fixed_abs, tag = 'smem constant byte address 0x4 - core index']
  #allocation1 [shape = 'u32[144,128]{1,0:T(1,128)}', space=vmem, size = 0x12000, scoped, tag = 'internal scratch']
  %s0 = inlined_call_operand.hbm [shape: f32[8,1000], index: 0, kind: input, shape index: {}]
  %s1 = inlined_call_operand.hbm [shape: bf16[1000,128], index: 1, kind: input, shape index: {}]
  %s2 = inlined_call_operand.hbm [shape: bf16[128,128], index: 2, kind: input, shape index: {}]
  %s3 = inlined_call_operand.hbm [shape: f32[8,128], index: 3, kind: output, shape index: {}]
  %s4 = sld [smem:[#allocation0]]
  $region34: #{testnn_forward.1} parent=0
    _
  %s6 = ssub.s32 1, %s4
  %s7 = scalar_select 0, %s6, %s4
  $region1: #{testnn_forward.1} parent=0
    #allocation2 [shape = 'u8[32768]{0}', space=vmem, size = 0x8000, scoped, tag = 'input window, operand 0, single buffered']
    #allocation3 [shape = 's32[1]{0}', space=sflag, size = 0x4, scoped, tag = 'scoped memory for testnn_forward.1']
    #allocation4 [shape = 's32[1]{0}', space=sflag, size = 0x4, scoped, tag = 'scoped memory for testnn_forward.1']
    #allocation5 [shape = 'u8[256000]{0}', space=vmem, size = 0x3e800, scoped, tag = 'input window, operand 1, single buffered']
    #allocation6 [shape = 's32[1]{0}', space=sflag, size = 0x4, scoped, tag = 'scoped memory for testnn_forward.1']
    #allocation7 [shape = 'u8[32768]{0}', space=vmem, size = 0x8000, scoped, tag = 'input window, operand 2, single buffered']
    #allocation8 [shape = 'u8[4096]{0}', space=vmem, size = 0x1000, scoped, tag = 'output window, operand 0, single buffered']
    %8 = vsyncpa [#allocation3], 0
    %9 = vsyncpa [#allocation6], 0
    %10 = vsyncpa [#allocation4], 0
    // Predicated region
    $region2: #{testnn_forward.1} parent=1 // pred_check
      _
    $region3: #{testnn_forward.1} parent=1 // pred_check_branch
      %12 = sbr.rel (0) target = $region5
    $region4: #{testnn_forward.1} parent=1 // pred_region
      %s14 = ssub.s32 1024, 1024
      %15 = vsyncadd [#allocation3], %s14
      %s17 = sshll.u32 [#allocation2], 4
      %s18 = int_to_ptr.vmem [resolvable:$true] %s17
      %20 = dma.hbm_to_vmem [thread:$0]  %s0, 1024, %s18, [#allocation3]
    $region5: #{testnn_forward.1} parent=1 // pred_fallthru
      _
    // Predicated region
    $region6: #{testnn_forward.1} parent=1 // pred_check
      _
    $region7: #{testnn_forward.1} parent=1 // pred_check_branch
      %22 = sbr.rel (0) target = $region9
    $region8: #{testnn_forward.1} parent=1 // pred_region
      %s24 = ssub.s32 8000, 8000
      %25 = vsyncadd [#allocation6], %s24
      %s26 = sshll.u32 [#allocation5], 4
      %s27 = int_to_ptr.vmem [resolvable:$true] %s26
      %32 = dma.hbm_to_vmem [thread:$0]  %s1, 8000, %s27, [#allocation6], 64, 64, 4
    $region9: #{testnn_forward.1} parent=1 // pred_fallthru
      _
    // Predicated region
    $region10: #{testnn_forward.1} parent=1 // pred_check
      _
    $region11: #{testnn_forward.1} parent=1 // pred_check_branch
      %34 = sbr.rel (0) target = $region13
    $region12: #{testnn_forward.1} parent=1 // pred_region
      %s36 = ssub.s32 1024, 1024
      %37 = vsyncadd [#allocation6], %s36
      %s38 = sshll.u32 [#allocation7], 4
      %s39 = int_to_ptr.vmem [resolvable:$true] %s38
      %44 = dma.hbm_to_vmem [thread:$0]  %s2, 1024, %s39, [#allocation6], 64, 64, 4
    $region13: #{testnn_forward.1} parent=1 // pred_fallthru
      _
    // Predicated region
    $region14: #{testnn_forward.1} parent=1 // pred_check
      _
    $region15: #{testnn_forward.1} parent=1 // pred_check_branch
      %46 = sbr.rel (0) target = $region17
    $region16: #{testnn_forward.1} parent=1 // pred_region
      %47 = dma.done [#allocation3], 1024
    $region17: #{testnn_forward.1} parent=1 // pred_fallthru
      _
    // Predicated region
    $region18: #{testnn_forward.1} parent=1 // pred_check
      _
    $region19: #{testnn_forward.1} parent=1 // pred_check_branch
      %49 = sbr.rel (0) target = $region21
    $region20: #{testnn_forward.1} parent=1 // pred_region
      %50 = dma.done [#allocation6], 8000
    $region21: #{testnn_forward.1} parent=1 // pred_fallthru
      _
    // Predicated region
    $region22: #{testnn_forward.1} parent=1 // pred_check
      _
    $region23: #{testnn_forward.1} parent=1 // pred_check_branch
      %52 = sbr.rel (0) target = $region25
    $region24: #{testnn_forward.1} parent=1 // pred_region
      %53 = dma.done [#allocation6], 1024
    $region25: #{testnn_forward.1} parent=1 // pred_fallthru
      _
    %v55 = vld [vmem:[#allocation2] sm:$0xff]
    %v56 = vld [vmem:[#allocation2 + $0x8] sm:$0xff]
    %v57 = vld [vmem:[#allocation2 + $0x10] sm:$0xff]
    %v58 = vld [vmem:[#allocation2 + $0x18] sm:$0xff]
    %v59 = vld [vmem:[#allocation2 + $0x20] sm:$0xff]
    %v60 = vld [vmem:[#allocation2 + $0x28] sm:$0xff]
    %v61 = vld [vmem:[#allocation2 + $0x30] sm:$0xff]
    %v62 = vld [vmem:[#allocation2 + $0x38] sm:$0xff]
    %v63 = vpack.c.bf16 %v55, %v55
    %v64 = vpack.c.bf16 %v56, %v56
    %v65 = vpack.c.bf16 %v57, %v57
    %v66 = vpack.c.bf16 %v58, %v58
    %v67 = vpack.c.bf16 %v59, %v59
    %v68 = vpack.c.bf16 %v60, %v60
    %v69 = vpack.c.bf16 %v61, %v61
    %v70 = vpack.c.bf16 %v62, %v62
    %v71 = vld [vmem:[#allocation5] sm:$0xf]
    %v72 = vld [vmem:[#allocation5 + $0x4] sm:$0xf]
    %v73 = vld [vmem:[#allocation5 + $0x8] sm:$0xf]
    %v74 = vld [vmem:[#allocation5 + $0xc] sm:$0xf]
    %v75 = vld [vmem:[#allocation5 + $0x10] sm:$0xf]
    %v76 = vld [vmem:[#allocation5 + $0x14] sm:$0xf]
    %v77 = vld [vmem:[#allocation5 + $0x18] sm:$0xf]
    %v78 = vld [vmem:[#allocation5 + $0x1c] sm:$0xf]
    %v79 = vld [vmem:[#allocation5 + $0x20] sm:$0xf]
    %v80 = vld [vmem:[#allocation5 + $0x24] sm:$0xf]
    %v81 = vld [vmem:[#allocation5 + $0x28] sm:$0xf]
    %v82 = vld [vmem:[#allocation5 + $0x2c] sm:$0xf]
    %v83 = vld [vmem:[#allocation5 + $0x30] sm:$0xf]
    %v84 = vld [vmem:[#allocation5 + $0x34] sm:$0xf]
    %v85 = vld [vmem:[#allocation5 + $0x38] sm:$0xf]
    %v86 = vld [vmem:[#allocation5 + $0x3c] sm:$0xf]
    %v87 = vld [vmem:[#allocation5 + $0x40] sm:$0xf]
    %v88 = vld [vmem:[#allocation5 + $0x44] sm:$0xf]
    %v89 = vld [vmem:[#allocation5 + $0x48] sm:$0xf]
    %v90 = vld [vmem:[#allocation5 + $0x4c] sm:$0xf]
    %v91 = vld [vmem:[#allocation5 + $0x50] sm:$0xf]
    %v92 = vld [vmem:[#allocation5 + $0x54] sm:$0xf]
    %v93 = vld [vmem:[#allocation5 + $0x58] sm:$0xf]
    %v94 = vld [vmem:[#allocation5 + $0x5c] sm:$0xf]
    %v95 = vld [vmem:[#allocation5 + $0x60] sm:$0xf]
    %v96 = vld [vmem:[#allocation5 + $0x64] sm:$0xf]
    %v97 = vld [vmem:[#allocation5 + $0x68] sm:$0xf]
    %v98 = vld [vmem:[#allocation5 + $0x6c] sm:$0xf]
    %v99 = vld [vmem:[#allocation5 + $0x70] sm:$0xf]
    %v100 = vld [vmem:[#allocation5 + $0x74] sm:$0xf]
    %v101 = vld [vmem:[#allocation5 + $0x78] sm:$0xf]
    %v102 = vld [vmem:[#allocation5 + $0x7c] sm:$0xf]
    %v103 = vld [vmem:[#allocation5 + $0x80] sm:$0xf]
    %v104 = vld [vmem:[#allocation5 + $0x84] sm:$0xf]
    %v105 = vld [vmem:[#allocation5 + $0x88] sm:$0xf]
    %v106 = vld [vmem:[#allocation5 + $0x8c] sm:$0xf]
    %v107 = vld [vmem:[#allocation5 + $0x90] sm:$0xf]
    %v108 = vld [vmem:[#allocation5 + $0x94] sm:$0xf]
    %v109 = vld [vmem:[#allocation5 + $0x98] sm:$0xf]
    %v110 = vld [vmem:[#allocation5 + $0x9c] sm:$0xf]
    %v111 = vld [vmem:[#allocation5 + $0xa0] sm:$0xf]
    %v112 = vld [vmem:[#allocation5 + $0xa4] sm:$0xf]
    %v113 = vld [vmem:[#allocation5 + $0xa8] sm:$0xf]
    %v114 = vld [vmem:[#allocation5 + $0xac] sm:$0xf]
    %v115 = vld [vmem:[#allocation5 + $0xb0] sm:$0xf]
    %v116 = vld [vmem:[#allocation5 + $0xb4] sm:$0xf]
    %v117 = vld [vmem:[#allocation5 + $0xb8] sm:$0xf]
    %v118 = vld [vmem:[#allocation5 + $0xbc] sm:$0xf]
    %v119 = vld [vmem:[#allocation5 + $0xc0] sm:$0xf]
    %v120 = vld [vmem:[#allocation5 + $0xc4] sm:$0xf]
    %v121 = vld [vmem:[#allocation5 + $0xc8] sm:$0xf]
    %v122 = vld [vmem:[#allocation5 + $0xcc] sm:$0xf]
    %v123 = vld [vmem:[#allocation5 + $0xd0] sm:$0xf]
    %v124 = vld [vmem:[#allocation5 + $0xd4] sm:$0xf]
    %v125 = vld [vmem:[#allocation5 + $0xd8] sm:$0xf]
    %v126 = vld [vmem:[#allocation5 + $0xdc] sm:$0xf]
    %v127 = vld [vmem:[#allocation5 + $0xe0] sm:$0xf]
    %v128 = vld [vmem:[#allocation5 + $0xe4] sm:$0xf]
    %v129 = vld [vmem:[#allocation5 + $0xe8] sm:$0xf]
    %v130 = vld [vmem:[#allocation5 + $0xec] sm:$0xf]
    %v131 = vld [vmem:[#allocation5 + $0xf0] sm:$0xf]
    %v132 = vld [vmem:[#allocation5 + $0xf4] sm:$0xf]
    %v133 = vld [vmem:[#allocation5 + $0xf8] sm:$0xf]
    %v134 = vld [vmem:[#allocation5 + $0xfc] sm:$0xf]
    %v135 = vld [vmem:[#allocation5 + $0x100] sm:$0xf]
    %v136 = vld [vmem:[#allocation5 + $0x104] sm:$0xf]
    %v137 = vld [vmem:[#allocation5 + $0x108] sm:$0xf]
    %v138 = vld [vmem:[#allocation5 + $0x10c] sm:$0xf]
    %v139 = vld [vmem:[#allocation5 + $0x110] sm:$0xf]
    %v140 = vld [vmem:[#allocation5 + $0x114] sm:$0xf]
    %v141 = vld [vmem:[#allocation5 + $0x118] sm:$0xf]
    %v142 = vld [vmem:[#allocation5 + $0x11c] sm:$0xf]
    %v143 = vld [vmem:[#allocation5 + $0x120] sm:$0xf]
    %v144 = vld [vmem:[#allocation5 + $0x124] sm:$0xf]
    %v145 = vld [vmem:[#allocation5 + $0x128] sm:$0xf]
    %v146 = vld [vmem:[#allocation5 + $0x12c] sm:$0xf]
    %v147 = vld [vmem:[#allocation5 + $0x130] sm:$0xf]
    %v148 = vld [vmem:[#allocation5 + $0x134] sm:$0xf]
    %v149 = vld [vmem:[#allocation5 + $0x138] sm:$0xf]
    %v150 = vld [vmem:[#allocation5 + $0x13c] sm:$0xf]
    %v151 = vld [vmem:[#allocation5 + $0x140] sm:$0xf]
    %v152 = vld [vmem:[#allocation5 + $0x144] sm:$0xf]
    %v153 = vld [vmem:[#allocation5 + $0x148] sm:$0xf]
    %v154 = vld [vmem:[#allocation5 + $0x14c] sm:$0xf]
    %v155 = vld [vmem:[#allocation5 + $0x150] sm:$0xf]
    %v156 = vld [vmem:[#allocation5 + $0x154] sm:$0xf]
    %v157 = vld [vmem:[#allocation5 + $0x158] sm:$0xf]
    %v158 = vld [vmem:[#allocation5 + $0x15c] sm:$0xf]
    %v159 = vld [vmem:[#allocation5 + $0x160] sm:$0xf]
    %v160 = vld [vmem:[#allocation5 + $0x164] sm:$0xf]
    %v161 = vld [vmem:[#allocation5 + $0x168] sm:$0xf]
    %v162 = vld [vmem:[#allocation5 + $0x16c] sm:$0xf]
    %v163 = vld [vmem:[#allocation5 + $0x170] sm:$0xf]
    %v164 = vld [vmem:[#allocation5 + $0x174] sm:$0xf]
    %v165 = vld [vmem:[#allocation5 + $0x178] sm:$0xf]
    %v166 = vld [vmem:[#allocation5 + $0x17c] sm:$0xf]
    %v167 = vld [vmem:[#allocation5 + $0x180] sm:$0xf]
    %v168 = vld [vmem:[#allocation5 + $0x184] sm:$0xf]
    %v169 = vld [vmem:[#allocation5 + $0x188] sm:$0xf]
    %v170 = vld [vmem:[#allocation5 + $0x18c] sm:$0xf]
    %v171 = vld [vmem:[#allocation5 + $0x190] sm:$0xf]
    %v172 = vld [vmem:[#allocation5 + $0x194] sm:$0xf]
    %v173 = vld [vmem:[#allocation5 + $0x198] sm:$0xf]
    %v174 = vld [vmem:[#allocation5 + $0x19c] sm:$0xf]
    %v175 = vld [vmem:[#allocation5 + $0x1a0] sm:$0xf]
    %v176 = vld [vmem:[#allocation5 + $0x1a4] sm:$0xf]
    %v177 = vld [vmem:[#allocation5 + $0x1a8] sm:$0xf]
    %v178 = vld [vmem:[#allocation5 + $0x1ac] sm:$0xf]
    %v179 = vld [vmem:[#allocation5 + $0x1b0] sm:$0xf]
    %v180 = vld [vmem:[#allocation5 + $0x1b4] sm:$0xf]
    %v181 = vld [vmem:[#allocation5 + $0x1b8] sm:$0xf]
    %v182 = vld [vmem:[#allocation5 + $0x1bc] sm:$0xf]
    %v183 = vld [vmem:[#allocation5 + $0x1c0] sm:$0xf]
    %v184 = vld [vmem:[#allocation5 + $0x1c4] sm:$0xf]
    %v185 = vld [vmem:[#allocation5 + $0x1c8] sm:$0xf]
    %v186 = vld [vmem:[#allocation5 + $0x1cc] sm:$0xf]
    %v187 = vld [vmem:[#allocation5 + $0x1d0] sm:$0xf]
    %v188 = vld [vmem:[#allocation5 + $0x1d4] sm:$0xf]
    %v189 = vld [vmem:[#allocation5 + $0x1d8] sm:$0xf]
    %v190 = vld [vmem:[#allocation5 + $0x1dc] sm:$0xf]
    %v191 = vld [vmem:[#allocation5 + $0x1e0] sm:$0xf]
    %v192 = vld [vmem:[#allocation5 + $0x1e4] sm:$0xf]
    %v193 = vld [vmem:[#allocation5 + $0x1e8] sm:$0xf]
    %v194 = vld [vmem:[#allocation5 + $0x1ec] sm:$0xf]
    %v195 = vld [vmem:[#allocation5 + $0x1f0] sm:$0xf]
    %v321 = vunpack.c.l.b16 %v71
    %v322 = vunpack.c.l.b16 %v72
    %v323 = vunpack.c.l.b16 %v73
    %v324 = vunpack.c.l.b16 %v74
    %v325 = vunpack.c.l.b16 %v75
    %v326 = vunpack.c.l.b16 %v76
    %v327 = vunpack.c.l.b16 %v77
    %v328 = vunpack.c.l.b16 %v78
    %v329 = vunpack.c.l.b16 %v79
    %v330 = vunpack.c.l.b16 %v80
    %v331 = vunpack.c.l.b16 %v81
    %v332 = vunpack.c.l.b16 %v82
    %v333 = vunpack.c.l.b16 %v83
    %v334 = vunpack.c.l.b16 %v84
    %v335 = vunpack.c.l.b16 %v85
    %v336 = vunpack.c.l.b16 %v86
    %v337 = vunpack.c.l.b16 %v87
    %v338 = vunpack.c.l.b16 %v88
    %v339 = vunpack.c.l.b16 %v89
    %v340 = vunpack.c.l.b16 %v90
    %v341 = vunpack.c.l.b16 %v91
    %v342 = vunpack.c.l.b16 %v92
    %v343 = vunpack.c.l.b16 %v93
    %v344 = vunpack.c.l.b16 %v94
    %v345 = vunpack.c.l.b16 %v95
    %v346 = vunpack.c.l.b16 %v96
    %v347 = vunpack.c.l.b16 %v97
    %v348 = vunpack.c.l.b16 %v98
    %v349 = vunpack.c.l.b16 %v99
    %v350 = vunpack.c.l.b16 %v100
    %v351 = vunpack.c.l.b16 %v101
    %v352 = vunpack.c.l.b16 %v102
    %v353 = vunpack.c.l.b16 %v103
    %v354 = vunpack.c.l.b16 %v104
    %v355 = vunpack.c.l.b16 %v105
    %v356 = vunpack.c.l.b16 %v106
    %v357 = vunpack.c.l.b16 %v107
    %v358 = vunpack.c.l.b16 %v108
    %v359 = vunpack.c.l.b16 %v109
    %v360 = vunpack.c.l.b16 %v110
    %v361 = vunpack.c.l.b16 %v111
    %v362 = vunpack.c.l.b16 %v112
    %v363 = vunpack.c.l.b16 %v113
    %v364 = vunpack.c.l.b16 %v114
    %v365 = vunpack.c.l.b16 %v115
    %v366 = vunpack.c.l.b16 %v116
    %v367 = vunpack.c.l.b16 %v117
    %v368 = vunpack.c.l.b16 %v118
    %v369 = vunpack.c.l.b16 %v119
    %v370 = vunpack.c.l.b16 %v120
    %v371 = vunpack.c.l.b16 %v121
    %v372 = vunpack.c.l.b16 %v122
    %v373 = vunpack.c.l.b16 %v123
    %v374 = vunpack.c.l.b16 %v124
    %v375 = vunpack.c.l.b16 %v125
    %v376 = vunpack.c.l.b16 %v126
    %v377 = vunpack.c.l.b16 %v127
    %v378 = vunpack.c.l.b16 %v128
    %v379 = vunpack.c.l.b16 %v129
    %v380 = vunpack.c.l.b16 %v130
    %v381 = vunpack.c.l.b16 %v131
    %v382 = vunpack.c.l.b16 %v132
    %v383 = vunpack.c.l.b16 %v133
    %v384 = vunpack.c.l.b16 %v134
    %v385 = vunpack.c.l.b16 %v135
    %v386 = vunpack.c.l.b16 %v136
    %v387 = vunpack.c.l.b16 %v137
    %v388 = vunpack.c.l.b16 %v138
    %v389 = vunpack.c.l.b16 %v139
    %v390 = vunpack.c.l.b16 %v140
    %v391 = vunpack.c.l.b16 %v141
    %v392 = vunpack.c.l.b16 %v142
    %v393 = vunpack.c.l.b16 %v143
    %v394 = vunpack.c.l.b16 %v144
    %v395 = vunpack.c.l.b16 %v145
    %v396 = vunpack.c.l.b16 %v146
    %v397 = vunpack.c.l.b16 %v147
    %v398 = vunpack.c.l.b16 %v148
    %v399 = vunpack.c.l.b16 %v149
    %v400 = vunpack.c.l.b16 %v150
    %v401 = vunpack.c.l.b16 %v151
    %v402 = vunpack.c.l.b16 %v152
    %v403 = vunpack.c.l.b16 %v153
    %v404 = vunpack.c.l.b16 %v154
    %v405 = vunpack.c.l.b16 %v155
    %v406 = vunpack.c.l.b16 %v156
    %v407 = vunpack.c.l.b16 %v157
    %v408 = vunpack.c.l.b16 %v158
    %v409 = vunpack.c.l.b16 %v159
    %v410 = vunpack.c.l.b16 %v160
    %v411 = vunpack.c.l.b16 %v161
    %v412 = vunpack.c.l.b16 %v162
    %v413 = vunpack.c.l.b16 %v163
    %v414 = vunpack.c.l.b16 %v164
    %v415 = vunpack.c.l.b16 %v165
    %v416 = vunpack.c.l.b16 %v166
    %v417 = vunpack.c.l.b16 %v167
    %v418 = vunpack.c.l.b16 %v168
    %v419 = vunpack.c.l.b16 %v169
    %v420 = vunpack.c.l.b16 %v170
    %v421 = vunpack.c.l.b16 %v171
    %v422 = vunpack.c.l.b16 %v172
    %v423 = vunpack.c.l.b16 %v173
    %v424 = vunpack.c.l.b16 %v174
    %v425 = vunpack.c.l.b16 %v175
    %v426 = vunpack.c.l.b16 %v176
    %v427 = vunpack.c.l.b16 %v177
    %v428 = vunpack.c.l.b16 %v178
    %v429 = vunpack.c.l.b16 %v179
    %v430 = vunpack.c.l.b16 %v180
    %v431 = vunpack.c.l.b16 %v181
    %v432 = vunpack.c.l.b16 %v182
    %v433 = vunpack.c.l.b16 %v183
    %v434 = vunpack.c.l.b16 %v184
    %v435 = vunpack.c.l.b16 %v185
    %v436 = vunpack.c.l.b16 %v186
    %v437 = vunpack.c.l.b16 %v187
    %v438 = vunpack.c.l.b16 %v188
    %v439 = vunpack.c.l.b16 %v189
    %v440 = vunpack.c.l.b16 %v190
    %v441 = vunpack.c.l.b16 %v191
    %v442 = vunpack.c.l.b16 %v192
    %v443 = vunpack.c.l.b16 %v193
    %v444 = vunpack.c.l.b16 %v194
    %v445 = vunpack.c.l.b16 %v195
    %v446 = vpack.c.b16 %v322, %v321
    %v447 = vpack.c.b16 %v324, %v323
    %v448 = vpack.c.b16 %v326, %v325
    %v449 = vpack.c.b16 %v328, %v327
    %v450 = vpack.c.b16 %v330, %v329
    %v451 = vpack.c.b16 %v332, %v331
    %v452 = vpack.c.b16 %v334, %v333
    %v453 = vpack.c.b16 %v336, %v335
    %v454 = vpack.c.b16 %v338, %v337
    %v455 = vpack.c.b16 %v340, %v339
    %v456 = vpack.c.b16 %v342, %v341
    %v457 = vpack.c.b16 %v344, %v343
    %v458 = vpack.c.b16 %v346, %v345
    %v459 = vpack.c.b16 %v348, %v347
    %v460 = vpack.c.b16 %v350, %v349
    %v461 = vpack.c.b16 %v352, %v351
    %v462 = vpack.c.b16 %v354, %v353
    %v463 = vpack.c.b16 %v356, %v355
    %v464 = vpack.c.b16 %v358, %v357
    %v465 = vpack.c.b16 %v360, %v359
    %v466 = vpack.c.b16 %v362, %v361
    %v467 = vpack.c.b16 %v364, %v363
    %v468 = vpack.c.b16 %v366, %v365
    %v469 = vpack.c.b16 %v368, %v367
    %v470 = vpack.c.b16 %v370, %v369
    %v471 = vpack.c.b16 %v372, %v371
    %v472 = vpack.c.b16 %v374, %v373
    %v473 = vpack.c.b16 %v376, %v375
    %v474 = vpack.c.b16 %v378, %v377
    %v475 = vpack.c.b16 %v380, %v379
    %v476 = vpack.c.b16 %v382, %v381
    %v477 = vpack.c.b16 %v384, %v383
    %v478 = vpack.c.b16 %v386, %v385
    %v479 = vpack.c.b16 %v388, %v387
    %v480 = vpack.c.b16 %v390, %v389
    %v481 = vpack.c.b16 %v392, %v391
    %v482 = vpack.c.b16 %v394, %v393
    %v483 = vpack.c.b16 %v396, %v395
    %v484 = vpack.c.b16 %v398, %v397
    %v485 = vpack.c.b16 %v400, %v399
    %v486 = vpack.c.b16 %v402, %v401
    %v487 = vpack.c.b16 %v404, %v403
    %v488 = vpack.c.b16 %v406, %v405
    %v489 = vpack.c.b16 %v408, %v407
    %v490 = vpack.c.b16 %v410, %v409
    %v491 = vpack.c.b16 %v412, %v411
    %v492 = vpack.c.b16 %v414, %v413
    %v493 = vpack.c.b16 %v416, %v415
    %v494 = vpack.c.b16 %v418, %v417
    %v495 = vpack.c.b16 %v420, %v419
    %v496 = vpack.c.b16 %v422, %v421
    %v497 = vpack.c.b16 %v424, %v423
    %v498 = vpack.c.b16 %v426, %v425
    %v499 = vpack.c.b16 %v428, %v427
    %v500 = vpack.c.b16 %v430, %v429
    %v501 = vpack.c.b16 %v432, %v431
    %v502 = vpack.c.b16 %v434, %v433
    %v503 = vpack.c.b16 %v436, %v435
    %v504 = vpack.c.b16 %v438, %v437
    %v505 = vpack.c.b16 %v440, %v439
    %v506 = vpack.c.b16 %v442, %v441
    %v507 = vpack.c.b16 %v444, %v443
    %v508 = vpack.c.b16 %v445, %v445
    %vm571 = vcmask 850944
    %v573 = vsel %vm571, %v70, 0
    %vm575 = vcmask 1043456
    %v577 = vsel %vm575, %v508, 0
    %579 = vmatprep.subr.bf16.mxu0 0
    %580 = vmatpush1.bf16.msra.mxu0 %v446
    %581 = vmatprep.subr.bf16.mxu0 0
    %582 = vmatpush1.bf16.msra.mxu0 %v447
    %583 = vmatprep.subr.bf16.mxu0 0
    %584 = vmatpush1.bf16.msra.mxu0 %v448
    %585 = vmatprep.subr.bf16.mxu0 0
    %586 = vmatpush1.bf16.msra.mxu0 %v449
    %587 = vmatprep.subr.bf16.mxu0 0
    %588 = vmatpush1.bf16.msra.mxu0 %v450
    %589 = vmatprep.subr.bf16.mxu0 0
    %590 = vmatpush1.bf16.msra.mxu0 %v451
    %591 = vmatprep.subr.bf16.mxu0 0
    %592 = vmatpush1.bf16.msra.mxu0 %v452
    %593 = vmatprep.subr.bf16.mxu0 0
    %594 = vmatpush1.bf16.msra.mxu0 %v453
    %595 = vmatprep.subr.bf16.mxu0 0
    %596 = vmatpush1.bf16.msra.mxu0 %v454
    %597 = vmatprep.subr.bf16.mxu0 0
    %598 = vmatpush1.bf16.msra.mxu0 %v455
    %599 = vmatprep.subr.bf16.mxu0 0
    %600 = vmatpush1.bf16.msra.mxu0 %v456
    %601 = vmatprep.subr.bf16.mxu0 0
    %602 = vmatpush1.bf16.msra.mxu0 %v457
    %603 = vmatprep.subr.bf16.mxu0 0
    %604 = vmatpush1.bf16.msra.mxu0 %v458
    %605 = vmatprep.subr.bf16.mxu0 0
    %606 = vmatpush1.bf16.msra.mxu0 %v459
    %607 = vmatprep.subr.bf16.mxu0 0
    %608 = vmatpush1.bf16.msra.mxu0 %v460
    %609 = vmatprep.subr.bf16.mxu0 0
    %610 = vmatpush1.bf16.msra.mxu0 %v461
    %611 = vmatprep.mubr.bf16.mxu0 %v64
    %612 = vmatmul.mubr.bf16.gmra.mrb[0].mxu0 %v63
    %v613 = vpop.f32.mrb[0].mxu0
    %v614 = vadd.f32 0.0, %v613
    %v615 = vpop.f32.mrb[0].mxu0
    %v616 = vpop.f32.mrb[0].mxu0
    %v617 = vpop.f32.mrb[0].mxu0
    %618 = vdwg.mxu0
    %619 = vmatprep.subr.bf16.mxu0 0
    %620 = vmatpush1.bf16.msra.mxu0 %v462
    %621 = vmatprep.subr.bf16.mxu0 0
    %622 = vmatpush1.bf16.msra.mxu0 %v463
    %623 = vmatprep.subr.bf16.mxu0 0
    %624 = vmatpush1.bf16.msra.mxu0 %v464
    %625 = vmatprep.subr.bf16.mxu0 0
    %626 = vmatpush1.bf16.msra.mxu0 %v465
    %627 = vmatprep.subr.bf16.mxu0 0
    %628 = vmatpush1.bf16.msra.mxu0 %v466
    %629 = vmatprep.subr.bf16.mxu0 0
    %630 = vmatpush1.bf16.msra.mxu0 %v467
    %631 = vmatprep.subr.bf16.mxu0 0
    %632 = vmatpush1.bf16.msra.mxu0 %v468
    %633 = vmatprep.subr.bf16.mxu0 0
    %634 = vmatpush1.bf16.msra.mxu0 %v469
    %635 = vmatprep.subr.bf16.mxu0 0
    %636 = vmatpush1.bf16.msra.mxu0 %v470
    %637 = vmatprep.subr.bf16.mxu0 0
    %638 = vmatpush1.bf16.msra.mxu0 %v471
    %639 = vmatprep.subr.bf16.mxu0 0
    %640 = vmatpush1.bf16.msra.mxu0 %v472
    %641 = vmatprep.subr.bf16.mxu0 0
    %642 = vmatpush1.bf16.msra.mxu0 %v473
    %643 = vmatprep.subr.bf16.mxu0 0
    %644 = vmatpush1.bf16.msra.mxu0 %v474
    %645 = vmatprep.subr.bf16.mxu0 0
    %646 = vmatpush1.bf16.msra.mxu0 %v475
    %647 = vmatprep.subr.bf16.mxu0 0
    %648 = vmatpush1.bf16.msra.mxu0 %v476
    %649 = vmatprep.subr.bf16.mxu0 0
    %650 = vmatpush1.bf16.msra.mxu0 %v477
    %651 = vmatprep.mubr.bf16.mxu0 %v66
    %652 = vmatmul.mubr.bf16.gmra.mrb[0].mxu0 %v65
    %v653 = vpop.f32.mrb[0].mxu0
    %v654 = vadd.f32 %v614, %v653
    %v655 = vpop.f32.mrb[0].mxu0
    %v656 = vpop.f32.mrb[0].mxu0
    %v657 = vpop.f32.mrb[0].mxu0
    %658 = vdwg.mxu0
    %659 = vmatprep.subr.bf16.mxu0 0
    %660 = vmatpush1.bf16.msra.mxu0 %v478
    %661 = vmatprep.subr.bf16.mxu0 0
    %662 = vmatpush1.bf16.msra.mxu0 %v479
    %663 = vmatprep.subr.bf16.mxu0 0
    %664 = vmatpush1.bf16.msra.mxu0 %v480
    %665 = vmatprep.subr.bf16.mxu0 0
    %666 = vmatpush1.bf16.msra.mxu0 %v481
    %667 = vmatprep.subr.bf16.mxu0 0
    %668 = vmatpush1.bf16.msra.mxu0 %v482
    %669 = vmatprep.subr.bf16.mxu0 0
    %670 = vmatpush1.bf16.msra.mxu0 %v483
    %671 = vmatprep.subr.bf16.mxu0 0
    %672 = vmatpush1.bf16.msra.mxu0 %v484
    %673 = vmatprep.subr.bf16.mxu0 0
    %674 = vmatpush1.bf16.msra.mxu0 %v485
    %675 = vmatprep.subr.bf16.mxu0 0
    %676 = vmatpush1.bf16.msra.mxu0 %v486
    %677 = vmatprep.subr.bf16.mxu0 0
    %678 = vmatpush1.bf16.msra.mxu0 %v487
    %679 = vmatprep.subr.bf16.mxu0 0
    %680 = vmatpush1.bf16.msra.mxu0 %v488
    %681 = vmatprep.subr.bf16.mxu0 0
    %682 = vmatpush1.bf16.msra.mxu0 %v489
    %683 = vmatprep.subr.bf16.mxu0 0
    %684 = vmatpush1.bf16.msra.mxu0 %v490
    %685 = vmatprep.subr.bf16.mxu0 0
    %686 = vmatpush1.bf16.msra.mxu0 %v491
    %687 = vmatprep.subr.bf16.mxu0 0
    %688 = vmatpush1.bf16.msra.mxu0 %v492
    %689 = vmatprep.subr.bf16.mxu0 0
    %690 = vmatpush1.bf16.msra.mxu0 %v493
    %691 = vmatprep.mubr.bf16.mxu0 %v68
    %692 = vmatmul.mubr.bf16.gmra.mrb[0].mxu0 %v67
    %v693 = vpop.f32.mrb[0].mxu0
    %v694 = vadd.f32 %v654, %v693
    %v695 = vpop.f32.mrb[0].mxu0
    %v696 = vpop.f32.mrb[0].mxu0
    %v697 = vpop.f32.mrb[0].mxu0
    %698 = vdwg.mxu0
    %699 = vmatprep.subr.bf16.mxu0 0
    %700 = vmatpush1.bf16.msra.mxu0 %v494
    %701 = vmatprep.subr.bf16.mxu0 0
    %702 = vmatpush1.bf16.msra.mxu0 %v495
    %703 = vmatprep.subr.bf16.mxu0 0
    %704 = vmatpush1.bf16.msra.mxu0 %v496
    %705 = vmatprep.subr.bf16.mxu0 0
    %706 = vmatpush1.bf16.msra.mxu0 %v497
    %707 = vmatprep.subr.bf16.mxu0 0
    %708 = vmatpush1.bf16.msra.mxu0 %v498
    %709 = vmatprep.subr.bf16.mxu0 0
    %710 = vmatpush1.bf16.msra.mxu0 %v499
    %711 = vmatprep.subr.bf16.mxu0 0
    %712 = vmatpush1.bf16.msra.mxu0 %v500
    %713 = vmatprep.subr.bf16.mxu0 0
    %714 = vmatpush1.bf16.msra.mxu0 %v501
    %715 = vmatprep.subr.bf16.mxu0 0
    %716 = vmatpush1.bf16.msra.mxu0 %v502
    %717 = vmatprep.subr.bf16.mxu0 0
    %718 = vmatpush1.bf16.msra.mxu0 %v503
    %719 = vmatprep.subr.bf16.mxu0 0
    %720 = vmatpush1.bf16.msra.mxu0 %v504
    %721 = vmatprep.subr.bf16.mxu0 0
    %722 = vmatpush1.bf16.msra.mxu0 %v505
    %723 = vmatprep.subr.bf16.mxu0 0
    %724 = vmatpush1.bf16.msra.mxu0 %v506
    %725 = vmatprep.subr.bf16.mxu0 0
    %726 = vmatpush1.bf16.msra.mxu0 %v507
    %727 = vmatprep.subr.bf16.mxu0 0
    %728 = vmatpush1.bf16.msra.mxu0 %v577
    %729 = vmatprep.subr.bf16.mxu0 0
    %730 = vmatpush1.bf16.msra.mxu0 0
    %731 = vmatprep.mubr.bf16.mxu0 %v573
    %732 = vmatmul.mubr.bf16.gmra.mrb[0].mxu0 %v69
    %v733 = vpop.f32.mrb[0].mxu0
    %v734 = vadd.f32 %v694, %v733
    %v735 = vpop.f32.mrb[0].mxu0
    %v736 = vpop.f32.mrb[0].mxu0
    %v737 = vpop.f32.mrb[0].mxu0
    %738 = vdwg.mxu0
    %v739 = vpack.c.bf16 %v734, %v734
    %v740 = vld [vmem:[#allocation7] sm:$0xf]
    %v741 = vld [vmem:[#allocation7 + $0x4] sm:$0xf]
    %v742 = vld [vmem:[#allocation7 + $0x8] sm:$0xf]
    %v743 = vld [vmem:[#allocation7 + $0xc] sm:$0xf]
    %v744 = vld [vmem:[#allocation7 + $0x10] sm:$0xf]
    %v745 = vld [vmem:[#allocation7 + $0x14] sm:$0xf]
    %v746 = vld [vmem:[#allocation7 + $0x18] sm:$0xf]
    %v747 = vld [vmem:[#allocation7 + $0x1c] sm:$0xf]
    %v748 = vld [vmem:[#allocation7 + $0x20] sm:$0xf]
    %v749 = vld [vmem:[#allocation7 + $0x24] sm:$0xf]
    %v750 = vld [vmem:[#allocation7 + $0x28] sm:$0xf]
    %v751 = vld [vmem:[#allocation7 + $0x2c] sm:$0xf]
    %v752 = vld [vmem:[#allocation7 + $0x30] sm:$0xf]
    %v753 = vld [vmem:[#allocation7 + $0x34] sm:$0xf]
    %v754 = vld [vmem:[#allocation7 + $0x38] sm:$0xf]
    %v755 = vld [vmem:[#allocation7 + $0x3c] sm:$0xf]
    %v772 = vunpack.c.l.b16 %v740
    %v773 = vunpack.c.l.b16 %v741
    %v774 = vunpack.c.l.b16 %v742
    %v775 = vunpack.c.l.b16 %v743
    %v776 = vunpack.c.l.b16 %v744
    %v777 = vunpack.c.l.b16 %v745
    %v778 = vunpack.c.l.b16 %v746
    %v779 = vunpack.c.l.b16 %v747
    %v780 = vunpack.c.l.b16 %v748
    %v781 = vunpack.c.l.b16 %v749
    %v782 = vunpack.c.l.b16 %v750
    %v783 = vunpack.c.l.b16 %v751
    %v784 = vunpack.c.l.b16 %v752
    %v785 = vunpack.c.l.b16 %v753
    %v786 = vunpack.c.l.b16 %v754
    %v787 = vunpack.c.l.b16 %v755
    %v788 = vpack.c.b16 %v773, %v772
    %v789 = vpack.c.b16 %v775, %v774
    %v790 = vpack.c.b16 %v777, %v776
    %v791 = vpack.c.b16 %v779, %v778
    %v792 = vpack.c.b16 %v781, %v780
    %v793 = vpack.c.b16 %v783, %v782
    %v794 = vpack.c.b16 %v785, %v784
    %v795 = vpack.c.b16 %v787, %v786
    %804 = vmatprep.subr.bf16.mxu0 0
    %805 = vmatpush1.bf16.msra.mxu0 %v788
    %806 = vmatprep.subr.bf16.mxu0 0
    %807 = vmatpush1.bf16.msra.mxu0 %v789
    %808 = vmatprep.subr.bf16.mxu0 0
    %809 = vmatpush1.bf16.msra.mxu0 %v790
    %810 = vmatprep.subr.bf16.mxu0 0
    %811 = vmatpush1.bf16.msra.mxu0 %v791
    %812 = vmatprep.subr.bf16.mxu0 0
    %813 = vmatpush1.bf16.msra.mxu0 %v792
    %814 = vmatprep.subr.bf16.mxu0 0
    %815 = vmatpush1.bf16.msra.mxu0 %v793
    %816 = vmatprep.subr.bf16.mxu0 0
    %817 = vmatpush1.bf16.msra.mxu0 %v794
    %818 = vmatprep.subr.bf16.mxu0 0
    %819 = vmatpush1.bf16.msra.mxu0 %v795
    %820 = vmatprep.subr.bf16.mxu0 0
    %821 = vmatpush1.bf16.msra.mxu0 0
    %822 = vmatprep.subr.bf16.mxu0 0
    %823 = vmatpush1.bf16.msra.mxu0 0
    %824 = vmatprep.subr.bf16.mxu0 0
    %825 = vmatpush1.bf16.msra.mxu0 0
    %826 = vmatprep.subr.bf16.mxu0 0
    %827 = vmatpush1.bf16.msra.mxu0 0
    %828 = vmatprep.subr.bf16.mxu0 0
    %829 = vmatpush1.bf16.msra.mxu0 0
    %830 = vmatprep.subr.bf16.mxu0 0
    %831 = vmatpush1.bf16.msra.mxu0 0
    %832 = vmatprep.subr.bf16.mxu0 0
    %833 = vmatpush1.bf16.msra.mxu0 0
    %834 = vmatprep.subr.bf16.mxu0 0
    %835 = vmatpush1.bf16.msra.mxu0 0
    %836 = vmatprep.mubr.bf16.mxu0 0
    %837 = vmatmul.mubr.bf16.gmra.mrb[0].mxu0 %v739
    %v838 = vpop.f32.mrb[0].mxu0
    %v839 = vadd.f32 0.0, %v838
    %v840 = vpop.f32.mrb[0].mxu0
    %v841 = vpop.f32.mrb[0].mxu0
    %v842 = vpop.f32.mrb[0].mxu0
    %843 = vdwg.mxu0
    %844 = vst [vmem:[#allocation8] sm:$0xff] %v839
    // Predicated region
    $region26: #{testnn_forward.1} parent=1 // pred_check
      _
    $region27: #{testnn_forward.1} parent=1 // pred_check_branch
      %846 = sbr.rel (0) target = $region29
    $region28: #{testnn_forward.1} parent=1 // pred_region
      %s848 = ssub.s32 128, 128
      %849 = vsyncadd [#allocation4], %s848
      %s851 = sshll.u32 [#allocation8], 4
      %s852 = int_to_ptr.vmem [resolvable:$true] %s851
      %854 = dma.vmem_to_hbm [thread:$0]  %s852, 128, %s3, [#allocation4]
    $region29: #{testnn_forward.1} parent=1 // pred_fallthru
      _
    // Predicated region
    $region30: #{testnn_forward.1} parent=1 // pred_check
      _
    $region31: #{testnn_forward.1} parent=1 // pred_check_branch
      %856 = sbr.rel (0) target = $region33
    $region32: #{testnn_forward.1} parent=1 // pred_region
      %857 = dma.done [#allocation4], 128
    $region33: #{testnn_forward.1} parent=1 // pred_fallthru
      _
    %858 = vsyncpa [#allocation3], 1
    %859 = vsyncpa [#allocation6], 1
    %860 = vsyncpa [#allocation4], 1

</llo_original>
